<compile_context>
chip_gen: v7x
topology: tpu7x:2x2x1
jax: 0.10.0
libtpu: 0.0.40
codegen_flags: <defaults>
</compile_context>

<pallas_src>
import functools

import jax
import jax.numpy as jnp
from jax import lax
from jax.experimental import pallas as pl
from jax.experimental.pallas import tpu as pltpu  # noqa: F401  (kept for the scaled variant)


def _lstm_seq_kernel(x_ref, wih_ref, whh_ref, b_ref, wcls_ref, bcls_ref, out_ref,
                     *, B, T):
    """Whole-sequence LSTM + classification head in one kernel.

    x_ref:    (B*T, D)  input sequence, batch-major rows (row b*T + t)
    wih_ref:  (D, 4H)   input->gate weights, columns ordered [i | f | o | g]
    whh_ref:  (H, 4H)   hidden->gate weights, same column order
    b_ref:    (1, 4H)   combined bias (b_ih + b_hh), same column order
    wcls_ref: (1, H)    classification weight (PyTorch Linear layout)
    bcls_ref: (1, 1)    classification bias
    out_ref:  (B, T, 1) sigmoid(Linear(h_t))
    """
    H = whh_ref.shape[0]

    # Load every constant once.
    wih = wih_ref[...]          # (D, 4H)
    whh = whh_ref[...]          # (H, 4H)
    bias = b_ref[...]           # (1, 4H)
    wcls = wcls_ref[...]        # (1, H)
    bcls = bcls_ref[...]        # (1, 1)

    # ---- Hoisted input projection: ONE MXU matmul over all B*T rows (+ bias),
    # kept as a register value (no scratch round-trip at this size).
    xg = jnp.dot(x_ref[...], wih, preferred_element_type=jnp.float32) + bias  # (B*T, 4H)
    xg = xg.reshape(B, T, 4 * H)     # layout-preserving sublane split

    # ---- Recurrence: only h @ W_hh -> activations is serial.  Fully unrolled
    # static loop (t is a Python int, so all slices below are static and the
    # xg extraction is off the loop-carried dependence chain).
    # NOTE: at B=2 / H=32 a VPU broadcast-FMA over K=H could beat this MXU dot's
    # push->pop latency on v5e/v6e; keep the dot here, revisit when tuning.
    h = jnp.zeros((B, H), jnp.float32)
    c = jnp.zeros((B, H), jnp.float32)
    hs = []
    for t in range(T):
        gates = xg[:, t, :] + jnp.dot(h, whh,
                                      preferred_element_type=jnp.float32)  # (B, 4H)
        # Columns are [i | f | o | g]: one sigmoid slab, one tanh slab.
        sig = jax.nn.sigmoid(gates[:, :3 * H])
        g_g = jnp.tanh(gates[:, 3 * H:])
        i_g = sig[:, 0 * H:1 * H]
        f_g = sig[:, 1 * H:2 * H]
        o_g = sig[:, 2 * H:3 * H]
        c = f_g * c + i_g * g_g
        h = o_g * jnp.tanh(c)
        hs.append(h)

    # ---- Classification head, fused over ALL timesteps: VPU multiply + lane
    # reduce, then a single bulk (B, T, 1) store aligned with the output layout.
    hs_all = jnp.stack(hs, axis=1)                                    # (B, T, H)
    logits = jnp.sum(hs_all * wcls, axis=-1, keepdims=True) + bcls    # (B, T, 1)
    out_ref[...] = jax.nn.sigmoid(logits).astype(out_ref.dtype)


@jax.jit
def lstm_classifier(x, w_ih, w_hh, b_ih, b_hh, w_cls, b_cls):
    """x: (B, T, D) f32; returns sigmoid(Linear(LSTM(x))) of shape (B, T, 1)."""
    B, T, D = x.shape
    H = w_hh.shape[1]

    # PyTorch LSTM gate block order is [i, f, g, o].  Permute to [i, f, o, g] so
    # the kernel can apply one sigmoid over [:, :3H] and one tanh over [:, 3H:].
    # (Wrapper permutation and kernel slice offsets must stay in sync.)
    def to_ifog(w):
        i, f, g, o = jnp.split(w, 4, axis=-1)
        return jnp.concatenate([i, f, o, g], axis=-1)

    wih_t = to_ifog(w_ih.T)                          # (D, 4H)
    whh_t = to_ifog(w_hh.T)                          # (H, 4H)
    bias = to_ifog(b_ih + b_hh).reshape(1, 4 * H)    # (1, 4H)
    bcls = b_cls.reshape(1, 1)                       # (1, 1)

    x2d = x.reshape(B * T, D)                        # free reshape, batch-major rows

    kernel = functools.partial(_lstm_seq_kernel, B=B, T=T)
    return pl.pallas_call(
        kernel,
        out_shape=jax.ShapeDtypeStruct((B, T, 1), jnp.float32),
    )(x2d, wih_t, whh_t, bias, w_cls, bcls)


def _reference(x, w_ih, w_hh, b_ih, b_hh, w_cls, b_cls):
    """Pure-JAX reference matching torch.nn.LSTM + Linear + Sigmoid."""
    B, T, D = x.shape
    H = w_hh.shape[1]

    def step(carry, x_t):
        h, c = carry
        gates = x_t @ w_ih.T + b_ih + h @ w_hh.T + b_hh
        i = jax.nn.sigmoid(gates[:, 0 * H:1 * H])
        f = jax.nn.sigmoid(gates[:, 1 * H:2 * H])
        g = jnp.tanh(gates[:, 2 * H:3 * H])
        o = jax.nn.sigmoid(gates[:, 3 * H:4 * H])
        c_new = f * c + i * g
        h_new = o * jnp.tanh(c_new)
        return (h_new, c_new), h_new

    h0 = jnp.zeros((B, H), jnp.float32)
    c0 = jnp.zeros((B, H), jnp.float32)
    _, hs = lax.scan(step, (h0, c0), jnp.transpose(x, (1, 0, 2)))
    out = jnp.transpose(hs, (1, 0, 2))                    # (B, T, H)
    logits = out @ w_cls.T + b_cls                        # (B, T, 1)
    return jax.nn.sigmoid(logits)


if __name__ == "__main__":
    B, T, D, H = 2, 8, 16, 32

    key = jax.random.PRNGKey(0)
    ks = jax.random.split(key, 7)
    scale = 1.0 / jnp.sqrt(H)
    # Deterministic synthetic parameters (shapes match nn.LSTM / nn.Linear).
    w_ih = jax.random.uniform(ks[0], (4 * H, D), jnp.float32, -scale, scale)
    w_hh = jax.random.uniform(ks[1], (4 * H, H), jnp.float32, -scale, scale)
    b_ih = jax.random.uniform(ks[2], (4 * H,), jnp.float32, -scale, scale)
    b_hh = jax.random.uniform(ks[3], (4 * H,), jnp.float32, -scale, scale)
    w_cls = jax.random.uniform(ks[4], (1, H), jnp.float32, -scale, scale)
    b_cls = jax.random.uniform(ks[5], (1,), jnp.float32, -scale, scale)

    x = jax.random.normal(ks[6], (B, T, D), jnp.float32)

    out = lstm_classifier(x, w_ih, w_hh, b_ih, b_hh, w_cls, b_cls)
    out = jax.block_until_ready(out)

    ref = _reference(x, w_ih, w_hh, b_ih, b_hh, w_cls, b_cls)
    assert out.shape == (B, T, 1), out.shape
    assert jnp.allclose(out, ref, atol=1e-5, rtol=1e-5), \
        f"max abs err {jnp.max(jnp.abs(out - ref))}"

    print("KERNEL_OK")
</pallas_src>

<mosaic_0001>
module attributes {stable_mosaic.version = 11 : i64} {
  func.func @_lstm_seq_kernel(%arg0: memref<16x16xf32, #tpu.memory_space<vmem>>, %arg1: memref<16x128xf32, #tpu.memory_space<vmem>>, %arg2: memref<32x128xf32, #tpu.memory_space<vmem>>, %arg3: memref<1x128xf32, #tpu.memory_space<vmem>>, %arg4: memref<1x32xf32, #tpu.memory_space<vmem>>, %arg5: memref<1x1xf32, #tpu.memory_space<vmem>>, %arg6: memref<2x8x1xf32, #tpu.memory_space<vmem>>) attributes {dimension_semantics = [], scalar_prefetch = 0 : i64, scratch_operands = 0 : i64, tpu.core_type = #tpu.core_type<tc>} {
    %c0 = arith.constant 0 : index
    %c0_0 = arith.constant 0 : index
    %0 = vector.load %arg1[%c0, %c0_0] : memref<16x128xf32, #tpu.memory_space<vmem>>, vector<16x128xf32>
    %c0_1 = arith.constant 0 : index
    %c0_2 = arith.constant 0 : index
    %1 = vector.load %arg2[%c0_1, %c0_2] : memref<32x128xf32, #tpu.memory_space<vmem>>, vector<32x128xf32>
    %c0_3 = arith.constant 0 : index
    %c0_4 = arith.constant 0 : index
    %2 = vector.load %arg3[%c0_3, %c0_4] : memref<1x128xf32, #tpu.memory_space<vmem>>, vector<1x128xf32>
    %c0_5 = arith.constant 0 : index
    %c0_6 = arith.constant 0 : index
    %3 = vector.load %arg4[%c0_5, %c0_6] : memref<1x32xf32, #tpu.memory_space<vmem>>, vector<1x32xf32>
    %c0_7 = arith.constant 0 : index
    %c0_8 = arith.constant 0 : index
    %4 = vector.load %arg5[%c0_7, %c0_8] : memref<1x1xf32, #tpu.memory_space<vmem>>, vector<1x1xf32>
    %c0_9 = arith.constant 0 : index
    %c0_10 = arith.constant 0 : index
    %5 = vector.load %arg0[%c0_9, %c0_10] : memref<16x16xf32, #tpu.memory_space<vmem>>, vector<16x16xf32>
    %cst = arith.constant dense<0.000000e+00> : vector<16x128xf32>
    %6 = tpu.matmul %5, %0, %cst {dimension_numbers = #tpu.dot_dimension_numbers<[1], [0], [0], [1], [0, 0, 1, 1], [], []>} : vector<16x16xf32>, vector<16x128xf32>, vector<16x128xf32> -> vector<16x128xf32>
    %7 = vector.broadcast %2 : vector<1x128xf32> to vector<16x128xf32>
    %8 = arith.addf %6, %7 : vector<16x128xf32>
    %9 = vector.shape_cast %8 : vector<16x128xf32> to vector<2x8x128xf32>
    %cst_11 = arith.constant 0.000000e+00 : f32
    %10 = vector.broadcast %cst_11 : f32 to vector<2x32xf32>
    %cst_12 = arith.constant 0.000000e+00 : f32
    %11 = vector.broadcast %cst_12 : f32 to vector<2x32xf32>
    %12 = vector.extract_strided_slice %9 {offsets = [0, 0, 0], sizes = [2, 1, 128], strides = [1, 1, 1]} : vector<2x8x128xf32> to vector<2x1x128xf32>
    %13 = vector.shape_cast %12 : vector<2x1x128xf32> to vector<2x128xf32>
    %cst_13 = arith.constant dense<0.000000e+00> : vector<2x128xf32>
    %14 = tpu.matmul %10, %1, %cst_13 {dimension_numbers = #tpu.dot_dimension_numbers<[1], [0], [0], [1], [0, 0, 1, 1], [], []>} : vector<2x32xf32>, vector<32x128xf32>, vector<2x128xf32> -> vector<2x128xf32>
    %15 = arith.addf %13, %14 : vector<2x128xf32>
    %16 = vector.extract_strided_slice %15 {offsets = [0, 0], sizes = [2, 96], strides = [1, 1]} : vector<2x128xf32> to vector<2x96xf32>
    %17 = arith.negf %16 : vector<2x96xf32>
    %18 = math.exp %17 : vector<2x96xf32>
    %cst_14 = arith.constant 1.000000e+00 : f32
    %19 = vector.broadcast %cst_14 : f32 to vector<2x96xf32>
    %20 = arith.addf %19, %18 : vector<2x96xf32>
    %21 = arith.divf %19, %20 : vector<2x96xf32>
    %22 = vector.extract_strided_slice %15 {offsets = [0, 96], sizes = [2, 32], strides = [1, 1]} : vector<2x128xf32> to vector<2x32xf32>
    %23 = math.tanh %22 : vector<2x32xf32>
    %24 = vector.extract_strided_slice %21 {offsets = [0, 0], sizes = [2, 32], strides = [1, 1]} : vector<2x96xf32> to vector<2x32xf32>
    %25 = vector.extract_strided_slice %21 {offsets = [0, 32], sizes = [2, 32], strides = [1, 1]} : vector<2x96xf32> to vector<2x32xf32>
    %26 = vector.extract_strided_slice %21 {offsets = [0, 64], sizes = [2, 32], strides = [1, 1]} : vector<2x96xf32> to vector<2x32xf32>
    %27 = arith.mulf %25, %11 : vector<2x32xf32>
    %28 = arith.mulf %24, %23 : vector<2x32xf32>
    %29 = arith.addf %27, %28 : vector<2x32xf32>
    %30 = math.tanh %29 : vector<2x32xf32>
    %31 = arith.mulf %26, %30 : vector<2x32xf32>
    %32 = vector.extract_strided_slice %9 {offsets = [0, 1, 0], sizes = [2, 1, 128], strides = [1, 1, 1]} : vector<2x8x128xf32> to vector<2x1x128xf32>
    %33 = vector.shape_cast %32 : vector<2x1x128xf32> to vector<2x128xf32>
    %cst_15 = arith.constant dense<0.000000e+00> : vector<2x128xf32>
    %34 = tpu.matmul %31, %1, %cst_15 {dimension_numbers = #tpu.dot_dimension_numbers<[1], [0], [0], [1], [0, 0, 1, 1], [], []>} : vector<2x32xf32>, vector<32x128xf32>, vector<2x128xf32> -> vector<2x128xf32>
    %35 = arith.addf %33, %34 : vector<2x128xf32>
    %36 = vector.extract_strided_slice %35 {offsets = [0, 0], sizes = [2, 96], strides = [1, 1]} : vector<2x128xf32> to vector<2x96xf32>
    %37 = arith.negf %36 : vector<2x96xf32>
    %38 = math.exp %37 : vector<2x96xf32>
    %cst_16 = arith.constant 1.000000e+00 : f32
    %39 = vector.broadcast %cst_16 : f32 to vector<2x96xf32>
    %40 = arith.addf %39, %38 : vector<2x96xf32>
    %41 = arith.divf %39, %40 : vector<2x96xf32>
    %42 = vector.extract_strided_slice %35 {offsets = [0, 96], sizes = [2, 32], strides = [1, 1]} : vector<2x128xf32> to vector<2x32xf32>
    %43 = math.tanh %42 : vector<2x32xf32>
    %44 = vector.extract_strided_slice %41 {offsets = [0, 0], sizes = [2, 32], strides = [1, 1]} : vector<2x96xf32> to vector<2x32xf32>
    %45 = vector.extract_strided_slice %41 {offsets = [0, 32], sizes = [2, 32], strides = [1, 1]} : vector<2x96xf32> to vector<2x32xf32>
    %46 = vector.extract_strided_slice %41 {offsets = [0, 64], sizes = [2, 32], strides = [1, 1]} : vector<2x96xf32> to vector<2x32xf32>
    %47 = arith.mulf %45, %29 : vector<2x32xf32>
    %48 = arith.mulf %44, %43 : vector<2x32xf32>
    %49 = arith.addf %47, %48 : vector<2x32xf32>
    %50 = math.tanh %49 : vector<2x32xf32>
    %51 = arith.mulf %46, %50 : vector<2x32xf32>
    %52 = vector.extract_strided_slice %9 {offsets = [0, 2, 0], sizes = [2, 1, 128], strides = [1, 1, 1]} : vector<2x8x128xf32> to vector<2x1x128xf32>
    %53 = vector.shape_cast %52 : vector<2x1x128xf32> to vector<2x128xf32>
    %cst_17 = arith.constant dense<0.000000e+00> : vector<2x128xf32>
    %54 = tpu.matmul %51, %1, %cst_17 {dimension_numbers = #tpu.dot_dimension_numbers<[1], [0], [0], [1], [0, 0, 1, 1], [], []>} : vector<2x32xf32>, vector<32x128xf32>, vector<2x128xf32> -> vector<2x128xf32>
    %55 = arith.addf %53, %54 : vector<2x128xf32>
    %56 = vector.extract_strided_slice %55 {offsets = [0, 0], sizes = [2, 96], strides = [1, 1]} : vector<2x128xf32> to vector<2x96xf32>
    %57 = arith.negf %56 : vector<2x96xf32>
    %58 = math.exp %57 : vector<2x96xf32>
    %cst_18 = arith.constant 1.000000e+00 : f32
    %59 = vector.broadcast %cst_18 : f32 to vector<2x96xf32>
    %60 = arith.addf %59, %58 : vector<2x96xf32>
    %61 = arith.divf %59, %60 : vector<2x96xf32>
    %62 = vector.extract_strided_slice %55 {offsets = [0, 96], sizes = [2, 32], strides = [1, 1]} : vector<2x128xf32> to vector<2x32xf32>
    %63 = math.tanh %62 : vector<2x32xf32>
    %64 = vector.extract_strided_slice %61 {offsets = [0, 0], sizes = [2, 32], strides = [1, 1]} : vector<2x96xf32> to vector<2x32xf32>
    %65 = vector.extract_strided_slice %61 {offsets = [0, 32], sizes = [2, 32], strides = [1, 1]} : vector<2x96xf32> to vector<2x32xf32>
    %66 = vector.extract_strided_slice %61 {offsets = [0, 64], sizes = [2, 32], strides = [1, 1]} : vector<2x96xf32> to vector<2x32xf32>
    %67 = arith.mulf %65, %49 : vector<2x32xf32>
    %68 = arith.mulf %64, %63 : vector<2x32xf32>
    %69 = arith.addf %67, %68 : vector<2x32xf32>
    %70 = math.tanh %69 : vector<2x32xf32>
    %71 = arith.mulf %66, %70 : vector<2x32xf32>
    %72 = vector.extract_strided_slice %9 {offsets = [0, 3, 0], sizes = [2, 1, 128], strides = [1, 1, 1]} : vector<2x8x128xf32> to vector<2x1x128xf32>
    %73 = vector.shape_cast %72 : vector<2x1x128xf32> to vector<2x128xf32>
    %cst_19 = arith.constant dense<0.000000e+00> : vector<2x128xf32>
    %74 = tpu.matmul %71, %1, %cst_19 {dimension_numbers = #tpu.dot_dimension_numbers<[1], [0], [0], [1], [0, 0, 1, 1], [], []>} : vector<2x32xf32>, vector<32x128xf32>, vector<2x128xf32> -> vector<2x128xf32>
    %75 = arith.addf %73, %74 : vector<2x128xf32>
    %76 = vector.extract_strided_slice %75 {offsets = [0, 0], sizes = [2, 96], strides = [1, 1]} : vector<2x128xf32> to vector<2x96xf32>
    %77 = arith.negf %76 : vector<2x96xf32>
    %78 = math.exp %77 : vector<2x96xf32>
    %cst_20 = arith.constant 1.000000e+00 : f32
    %79 = vector.broadcast %cst_20 : f32 to vector<2x96xf32>
    %80 = arith.addf %79, %78 : vector<2x96xf32>
    %81 = arith.divf %79, %80 : vector<2x96xf32>
    %82 = vector.extract_strided_slice %75 {offsets = [0, 96], sizes = [2, 32], strides = [1, 1]} : vector<2x128xf32> to vector<2x32xf32>
    %83 = math.tanh %82 : vector<2x32xf32>
    %84 = vector.extract_strided_slice %81 {offsets = [0, 0], sizes = [2, 32], strides = [1, 1]} : vector<2x96xf32> to vector<2x32xf32>
    %85 = vector.extract_strided_slice %81 {offsets = [0, 32], sizes = [2, 32], strides = [1, 1]} : vector<2x96xf32> to vector<2x32xf32>
    %86 = vector.extract_strided_slice %81 {offsets = [0, 64], sizes = [2, 32], strides = [1, 1]} : vector<2x96xf32> to vector<2x32xf32>
    %87 = arith.mulf %85, %69 : vector<2x32xf32>
    %88 = arith.mulf %84, %83 : vector<2x32xf32>
    %89 = arith.addf %87, %88 : vector<2x32xf32>
    %90 = math.tanh %89 : vector<2x32xf32>
    %91 = arith.mulf %86, %90 : vector<2x32xf32>
    %92 = vector.extract_strided_slice %9 {offsets = [0, 4, 0], sizes = [2, 1, 128], strides = [1, 1, 1]} : vector<2x8x128xf32> to vector<2x1x128xf32>
    %93 = vector.shape_cast %92 : vector<2x1x128xf32> to vector<2x128xf32>
    %cst_21 = arith.constant dense<0.000000e+00> : vector<2x128xf32>
    %94 = tpu.matmul %91, %1, %cst_21 {dimension_numbers = #tpu.dot_dimension_numbers<[1], [0], [0], [1], [0, 0, 1, 1], [], []>} : vector<2x32xf32>, vector<32x128xf32>, vector<2x128xf32> -> vector<2x128xf32>
    %95 = arith.addf %93, %94 : vector<2x128xf32>
    %96 = vector.extract_strided_slice %95 {offsets = [0, 0], sizes = [2, 96], strides = [1, 1]} : vector<2x128xf32> to vector<2x96xf32>
    %97 = arith.negf %96 : vector<2x96xf32>
    %98 = math.exp %97 : vector<2x96xf32>
    %cst_22 = arith.constant 1.000000e+00 : f32
    %99 = vector.broadcast %cst_22 : f32 to vector<2x96xf32>
    %100 = arith.addf %99, %98 : vector<2x96xf32>
    %101 = arith.divf %99, %100 : vector<2x96xf32>
    %102 = vector.extract_strided_slice %95 {offsets = [0, 96], sizes = [2, 32], strides = [1, 1]} : vector<2x128xf32> to vector<2x32xf32>
    %103 = math.tanh %102 : vector<2x32xf32>
    %104 = vector.extract_strided_slice %101 {offsets = [0, 0], sizes = [2, 32], strides = [1, 1]} : vector<2x96xf32> to vector<2x32xf32>
    %105 = vector.extract_strided_slice %101 {offsets = [0, 32], sizes = [2, 32], strides = [1, 1]} : vector<2x96xf32> to vector<2x32xf32>
    %106 = vector.extract_strided_slice %101 {offsets = [0, 64], sizes = [2, 32], strides = [1, 1]} : vector<2x96xf32> to vector<2x32xf32>
    %107 = arith.mulf %105, %89 : vector<2x32xf32>
    %108 = arith.mulf %104, %103 : vector<2x32xf32>
    %109 = arith.addf %107, %108 : vector<2x32xf32>
    %110 = math.tanh %109 : vector<2x32xf32>
    %111 = arith.mulf %106, %110 : vector<2x32xf32>
    %112 = vector.extract_strided_slice %9 {offsets = [0, 5, 0], sizes = [2, 1, 128], strides = [1, 1, 1]} : vector<2x8x128xf32> to vector<2x1x128xf32>
    %113 = vector.shape_cast %112 : vector<2x1x128xf32> to vector<2x128xf32>
    %cst_23 = arith.constant dense<0.000000e+00> : vector<2x128xf32>
    %114 = tpu.matmul %111, %1, %cst_23 {dimension_numbers = #tpu.dot_dimension_numbers<[1], [0], [0], [1], [0, 0, 1, 1], [], []>} : vector<2x32xf32>, vector<32x128xf32>, vector<2x128xf32> -> vector<2x128xf32>
    %115 = arith.addf %113, %114 : vector<2x128xf32>
    %116 = vector.extract_strided_slice %115 {offsets = [0, 0], sizes = [2, 96], strides = [1, 1]} : vector<2x128xf32> to vector<2x96xf32>
    %117 = arith.negf %116 : vector<2x96xf32>
    %118 = math.exp %117 : vector<2x96xf32>
    %cst_24 = arith.constant 1.000000e+00 : f32
    %119 = vector.broadcast %cst_24 : f32 to vector<2x96xf32>
    %120 = arith.addf %119, %118 : vector<2x96xf32>
    %121 = arith.divf %119, %120 : vector<2x96xf32>
    %122 = vector.extract_strided_slice %115 {offsets = [0, 96], sizes = [2, 32], strides = [1, 1]} : vector<2x128xf32> to vector<2x32xf32>
    %123 = math.tanh %122 : vector<2x32xf32>
    %124 = vector.extract_strided_slice %121 {offsets = [0, 0], sizes = [2, 32], strides = [1, 1]} : vector<2x96xf32> to vector<2x32xf32>
    %125 = vector.extract_strided_slice %121 {offsets = [0, 32], sizes = [2, 32], strides = [1, 1]} : vector<2x96xf32> to vector<2x32xf32>
    %126 = vector.extract_strided_slice %121 {offsets = [0, 64], sizes = [2, 32], strides = [1, 1]} : vector<2x96xf32> to vector<2x32xf32>
    %127 = arith.mulf %125, %109 : vector<2x32xf32>
    %128 = arith.mulf %124, %123 : vector<2x32xf32>
    %129 = arith.addf %127, %128 : vector<2x32xf32>
    %130 = math.tanh %129 : vector<2x32xf32>
    %131 = arith.mulf %126, %130 : vector<2x32xf32>
    %132 = vector.extract_strided_slice %9 {offsets = [0, 6, 0], sizes = [2, 1, 128], strides = [1, 1, 1]} : vector<2x8x128xf32> to vector<2x1x128xf32>
    %133 = vector.shape_cast %132 : vector<2x1x128xf32> to vector<2x128xf32>
    %cst_25 = arith.constant dense<0.000000e+00> : vector<2x128xf32>
    %134 = tpu.matmul %131, %1, %cst_25 {dimension_numbers = #tpu.dot_dimension_numbers<[1], [0], [0], [1], [0, 0, 1, 1], [], []>} : vector<2x32xf32>, vector<32x128xf32>, vector<2x128xf32> -> vector<2x128xf32>
    %135 = arith.addf %133, %134 : vector<2x128xf32>
    %136 = vector.extract_strided_slice %135 {offsets = [0, 0], sizes = [2, 96], strides = [1, 1]} : vector<2x128xf32> to vector<2x96xf32>
    %137 = arith.negf %136 : vector<2x96xf32>
    %138 = math.exp %137 : vector<2x96xf32>
    %cst_26 = arith.constant 1.000000e+00 : f32
    %139 = vector.broadcast %cst_26 : f32 to vector<2x96xf32>
    %140 = arith.addf %139, %138 : vector<2x96xf32>
    %141 = arith.divf %139, %140 : vector<2x96xf32>
    %142 = vector.extract_strided_slice %135 {offsets = [0, 96], sizes = [2, 32], strides = [1, 1]} : vector<2x128xf32> to vector<2x32xf32>
    %143 = math.tanh %142 : vector<2x32xf32>
    %144 = vector.extract_strided_slice %141 {offsets = [0, 0], sizes = [2, 32], strides = [1, 1]} : vector<2x96xf32> to vector<2x32xf32>
    %145 = vector.extract_strided_slice %141 {offsets = [0, 32], sizes = [2, 32], strides = [1, 1]} : vector<2x96xf32> to vector<2x32xf32>
    %146 = vector.extract_strided_slice %141 {offsets = [0, 64], sizes = [2, 32], strides = [1, 1]} : vector<2x96xf32> to vector<2x32xf32>
    %147 = arith.mulf %145, %129 : vector<2x32xf32>
    %148 = arith.mulf %144, %143 : vector<2x32xf32>
    %149 = arith.addf %147, %148 : vector<2x32xf32>
    %150 = math.tanh %149 : vector<2x32xf32>
    %151 = arith.mulf %146, %150 : vector<2x32xf32>
    %152 = vector.extract_strided_slice %9 {offsets = [0, 7, 0], sizes = [2, 1, 128], strides = [1, 1, 1]} : vector<2x8x128xf32> to vector<2x1x128xf32>
    %153 = vector.shape_cast %152 : vector<2x1x128xf32> to vector<2x128xf32>
    %cst_27 = arith.constant dense<0.000000e+00> : vector<2x128xf32>
    %154 = tpu.matmul %151, %1, %cst_27 {dimension_numbers = #tpu.dot_dimension_numbers<[1], [0], [0], [1], [0, 0, 1, 1], [], []>} : vector<2x32xf32>, vector<32x128xf32>, vector<2x128xf32> -> vector<2x128xf32>
    %155 = arith.addf %153, %154 : vector<2x128xf32>
    %156 = vector.extract_strided_slice %155 {offsets = [0, 0], sizes = [2, 96], strides = [1, 1]} : vector<2x128xf32> to vector<2x96xf32>
    %157 = arith.negf %156 : vector<2x96xf32>
    %158 = math.exp %157 : vector<2x96xf32>
    %cst_28 = arith.constant 1.000000e+00 : f32
    %159 = vector.broadcast %cst_28 : f32 to vector<2x96xf32>
    %160 = arith.addf %159, %158 : vector<2x96xf32>
    %161 = arith.divf %159, %160 : vector<2x96xf32>
    %162 = vector.extract_strided_slice %155 {offsets = [0, 96], sizes = [2, 32], strides = [1, 1]} : vector<2x128xf32> to vector<2x32xf32>
    %163 = math.tanh %162 : vector<2x32xf32>
    %164 = vector.extract_strided_slice %161 {offsets = [0, 0], sizes = [2, 32], strides = [1, 1]} : vector<2x96xf32> to vector<2x32xf32>
    %165 = vector.extract_strided_slice %161 {offsets = [0, 32], sizes = [2, 32], strides = [1, 1]} : vector<2x96xf32> to vector<2x32xf32>
    %166 = vector.extract_strided_slice %161 {offsets = [0, 64], sizes = [2, 32], strides = [1, 1]} : vector<2x96xf32> to vector<2x32xf32>
    %167 = arith.mulf %165, %149 : vector<2x32xf32>
    %168 = arith.mulf %164, %163 : vector<2x32xf32>
    %169 = arith.addf %167, %168 : vector<2x32xf32>
    %170 = math.tanh %169 : vector<2x32xf32>
    %171 = arith.mulf %166, %170 : vector<2x32xf32>
    %172 = vector.shape_cast %31 : vector<2x32xf32> to vector<2x1x32xf32>
    %173 = vector.shape_cast %51 : vector<2x32xf32> to vector<2x1x32xf32>
    %174 = vector.shape_cast %71 : vector<2x32xf32> to vector<2x1x32xf32>
    %175 = vector.shape_cast %91 : vector<2x32xf32> to vector<2x1x32xf32>
    %176 = vector.shape_cast %111 : vector<2x32xf32> to vector<2x1x32xf32>
    %177 = vector.shape_cast %131 : vector<2x32xf32> to vector<2x1x32xf32>
    %178 = vector.shape_cast %151 : vector<2x32xf32> to vector<2x1x32xf32>
    %179 = vector.shape_cast %171 : vector<2x32xf32> to vector<2x1x32xf32>
    %180 = tpu.concatenate %172, %173, %174, %175, %176, %177, %178, %179 in 1 : vector<2x1x32xf32>, vector<2x1x32xf32>, vector<2x1x32xf32>, vector<2x1x32xf32>, vector<2x1x32xf32>, vector<2x1x32xf32>, vector<2x1x32xf32>, vector<2x1x32xf32> -> vector<2x8x32xf32>
    %181 = vector.shape_cast %3 : vector<1x32xf32> to vector<1x1x32xf32>
    %182 = vector.broadcast %181 : vector<1x1x32xf32> to vector<2x8x32xf32>
    %183 = arith.mulf %180, %182 : vector<2x8x32xf32>
    %cst_29 = arith.constant dense<0.000000e+00> : vector<2x8xf32>
    %184 = vector.multi_reduction <add>, %183, %cst_29 [2] : vector<2x8x32xf32> to vector<2x8xf32>
    %185 = vector.shape_cast %184 : vector<2x8xf32> to vector<2x8x1xf32>
    %186 = vector.shape_cast %4 : vector<1x1xf32> to vector<1x1x1xf32>
    %187 = vector.broadcast %186 : vector<1x1x1xf32> to vector<2x8x1xf32>
    %188 = arith.addf %185, %187 : vector<2x8x1xf32>
    %189 = arith.negf %188 : vector<2x8x1xf32>
    %190 = math.exp %189 : vector<2x8x1xf32>
    %cst_30 = arith.constant 1.000000e+00 : f32
    %191 = vector.broadcast %cst_30 : f32 to vector<2x8x1xf32>
    %192 = arith.addf %191, %190 : vector<2x8x1xf32>
    %193 = arith.divf %191, %192 : vector<2x8x1xf32>
    %c0_31 = arith.constant 0 : index
    %c0_32 = arith.constant 0 : index
    %c0_33 = arith.constant 0 : index
    %194 = vector.load %arg6[%c0_31, %c0_32, %c0_33] : memref<2x8x1xf32, #tpu.memory_space<vmem>>, vector<2x8x1xf32>
    tpu.vector_store %arg6[%c0_31, %c0_32, %c0_33], %193 {strides = array<i32>} : memref<2x8x1xf32, #tpu.memory_space<vmem>>, vector<2x8x1xf32>,
    return
  }
}

</mosaic_0001>

<llo_original>
// kernel: lstm_classifier.1
$region0: #{lstm_classifier.1}
  #allocation0 [shape = 'u32[]', space=smem, size = 0x4, offset = 0x4, fixed_abs, tag = 'smem constant byte address 0x4 - core index']
  #allocation1 [shape = 'u32[144,128]{1,0:T(1,128)}', space=vmem, size = 0x12000, scoped, tag = 'internal scratch']
  #allocation2 [shape = 'f32[1,1]{1,0:T(1,128)S(1)}', space=vmem, size = 0x200, scoped, tag = 'scoped memory for lstm_classifier.1']
  %s0 = inlined_call_operand.vmem [shape: f32[16,16], index: 0, kind: input, shape index: {}]
  %s1 = inlined_call_operand.vmem [shape: f32[16,128], index: 1, kind: input, shape index: {}]
  %s2 = inlined_call_operand.vmem [shape: f32[32,128], index: 2, kind: input, shape index: {}]
  %s3 = inlined_call_operand.vmem [shape: f32[1,128], index: 3, kind: input, shape index: {}]
  %s4 = inlined_call_operand.vmem [shape: f32[1,32], index: 4, kind: input, shape index: {}]
  %s5 = inlined_call_operand.<no memory space> [shape: f32[1,1], index: 5, kind: input, shape index: {}]
  %s6 = inlined_call_operand.vmem [shape: f32[2,8,1], index: 6, kind: output, shape index: {}]
  %s7 = sld [smem:[#allocation0]]
  $region34: #{lstm_classifier.1} parent=0
    _
  %s9 = ssub.s32 1, %s7
  %s10 = scalar_select 0, %s9, %s7
  %v11 = vstv %s5
  %12 = vst [vmem:[#allocation2] sm:$0x1] %v11
  // Predicated region
  $region2: #{lstm_classifier.1} parent=0 // pred_check
    _
  $region3: #{lstm_classifier.1} parent=0 // pred_check_branch
    %14 = sbr.rel (0) target = $region5
  $region4: #{lstm_classifier.1} parent=0 // pred_region
    _
  $region5: #{lstm_classifier.1} parent=0 // pred_fallthru
    _
  // Predicated region
  $region6: #{lstm_classifier.1} parent=0 // pred_check
    _
  $region7: #{lstm_classifier.1} parent=0 // pred_check_branch
    %16 = sbr.rel (0) target = $region9
  $region8: #{lstm_classifier.1} parent=0 // pred_region
    _
  $region9: #{lstm_classifier.1} parent=0 // pred_fallthru
    _
  // Predicated region
  $region10: #{lstm_classifier.1} parent=0 // pred_check
    _
  $region11: #{lstm_classifier.1} parent=0 // pred_check_branch
    %18 = sbr.rel (0) target = $region13
  $region12: #{lstm_classifier.1} parent=0 // pred_region
    _
  $region13: #{lstm_classifier.1} parent=0 // pred_fallthru
    _
  // Predicated region
  $region14: #{lstm_classifier.1} parent=0 // pred_check
    _
  $region15: #{lstm_classifier.1} parent=0 // pred_check_branch
    %20 = sbr.rel (0) target = $region17
  $region16: #{lstm_classifier.1} parent=0 // pred_region
    _
  $region17: #{lstm_classifier.1} parent=0 // pred_fallthru
    _
  // Predicated region
  $region18: #{lstm_classifier.1} parent=0 // pred_check
    _
  $region19: #{lstm_classifier.1} parent=0 // pred_check_branch
    %22 = sbr.rel (0) target = $region21
  $region20: #{lstm_classifier.1} parent=0 // pred_region
    _
  $region21: #{lstm_classifier.1} parent=0 // pred_fallthru
    _
  // Predicated region
  $region22: #{lstm_classifier.1} parent=0 // pred_check
    _
  $region23: #{lstm_classifier.1} parent=0 // pred_check_branch
    %24 = sbr.rel (0) target = $region25
  $region24: #{lstm_classifier.1} parent=0 // pred_region
    _
  $region25: #{lstm_classifier.1} parent=0 // pred_fallthru
    _
  %v25 = vld [vmem:[%s1] sm:$0xff]
  %v26 = vld [vmem:[%s1 + $0x8] sm:$0xff]
  %v27 = vld [vmem:[%s2] sm:$0xff]
  %v28 = vld [vmem:[%s2 + $0x8] sm:$0xff]
  %v29 = vld [vmem:[%s2 + $0x10] sm:$0xff]
  %v30 = vld [vmem:[%s2 + $0x18] sm:$0xff]
  %v31 = vld [vmem:[%s3] sm:$0x1]
  %v32 = vld [vmem:[%s4] sm:$0x1]
  %v33 = vld [vmem:[#allocation2] sm:$0x1]
  %v34 = vld [vmem:[%s0] sm:$0xff]
  %v35 = vld [vmem:[%s0 + $0x8] sm:$0xff]
  %v37 = vlaneseq
  %v38 = vshrl.u32 %v37, 7
  %v39 = vsub.s32 0, %v38
  %v40 = vrot.slane %v31, %v39
  %vm42 = vcmask 130048
  %v44 = vsel %vm42, %v34, 0
  %v47 = vsel %vm42, %v35, 0
  %49 = vmatprep.subr.mxu0 0.0
  %50 = vmatpush1.msra.mxu0 %v25
  %51 = vmatprep.subr.mxu0 0.0
  %52 = vmatpush1.msra.mxu0 %v26
  %53 = vmatprep.subr.mxu0 0.0
  %54 = vmatpush1.msra.mxu0 0.0
  %55 = vmatprep.subr.mxu0 0.0
  %56 = vmatpush1.msra.mxu0 0.0
  %57 = vmatprep.subr.mxu0 0.0
  %58 = vmatpush1.msra.mxu0 0.0
  %59 = vmatprep.subr.mxu0 0.0
  %60 = vmatpush1.msra.mxu0 0.0
  %61 = vmatprep.subr.mxu0 0.0
  %62 = vmatpush1.msra.mxu0 0.0
  %63 = vmatprep.subr.mxu0 0.0
  %64 = vmatpush1.msra.mxu0 0.0
  %65 = vmatprep.subr.mxu0 0.0
  %66 = vmatpush1.msra.mxu0 0.0
  %67 = vmatprep.subr.mxu0 0.0
  %68 = vmatpush1.msra.mxu0 0.0
  %69 = vmatprep.subr.mxu0 0.0
  %70 = vmatpush1.msra.mxu0 0.0
  %71 = vmatprep.subr.mxu0 0.0
  %72 = vmatpush1.msra.mxu0 0.0
  %73 = vmatprep.subr.mxu0 0.0
  %74 = vmatpush1.msra.mxu0 0.0
  %75 = vmatprep.subr.mxu0 0.0
  %76 = vmatpush1.msra.mxu0 0.0
  %77 = vmatprep.subr.mxu0 0.0
  %78 = vmatpush1.msra.mxu0 0.0
  %79 = vmatprep.subr.mxu0 0.0
  %80 = vmatpush1.msra.mxu0 0.0
  %81 = vmatprep.subr.mxu0 0.0
  %82 = vmatpush1.msra.mxu0 0.0
  %83 = vmatprep.subr.mxu0 0.0
  %84 = vmatpush1.msra.mxu0 0.0
  %85 = vmatprep.subr.mxu0 0.0
  %86 = vmatpush1.msra.mxu0 0.0
  %87 = vmatprep.subr.mxu0 0.0
  %88 = vmatpush1.msra.mxu0 0.0
  %89 = vmatprep.subr.mxu0 0.0
  %90 = vmatpush1.msra.mxu0 0.0
  %91 = vmatprep.subr.mxu0 0.0
  %92 = vmatpush1.msra.mxu0 0.0
  %93 = vmatprep.subr.mxu0 0.0
  %94 = vmatpush1.msra.mxu0 0.0
  %95 = vmatprep.subr.mxu0 0.0
  %96 = vmatpush1.msra.mxu0 0.0
  %97 = vmatprep.subr.mxu0 0.0
  %98 = vmatpush1.msra.mxu0 0.0
  %99 = vmatprep.subr.mxu0 0.0
  %100 = vmatpush1.msra.mxu0 0.0
  %101 = vmatprep.subr.mxu0 0.0
  %102 = vmatpush1.msra.mxu0 0.0
  %103 = vmatprep.subr.mxu0 0.0
  %104 = vmatpush1.msra.mxu0 0.0
  %105 = vmatprep.subr.mxu0 0.0
  %106 = vmatpush1.msra.mxu0 0.0
  %107 = vmatprep.subr.mxu0 0.0
  %108 = vmatpush1.msra.mxu0 0.0
  %109 = vmatprep.subr.mxu0 0.0
  %110 = vmatpush1.msra.mxu0 0.0
  %111 = vmatprep.subr.mxu0 0.0
  %112 = vmatpush1.msra.mxu0 0.0
  %113 = vmatprep.mubr.f32.mxu0 0.0
  %114 = vmatmul.mubr.f32.gmra.mrb[0].mxu0 %v44
  %v115 = vpop.f32.mrb[0].mxu0
  %v116 = vadd.f32 %v40, %v115
  %v117 = vpop.f32.mrb[0].mxu0
  %118 = vmatprep.mubr.f32.mxu0 0.0
  %119 = vmatmul.mubr.f32.gmra.mrb[0].mxu0 %v47
  %v120 = vpop.f32.mrb[0].mxu0
  %v121 = vadd.f32 %v40, %v120
  %v122 = vpop.f32.mrb[0].mxu0
  %123 = vdwg.mxu0
  %vm124 = vcmask 261120
  %v126 = vsel %vm124, 0.0, 0
  %128 = vmatprep.subr.mxu0 0.0
  %129 = vmatpush1.msra.mxu0 %v27
  %130 = vmatprep.subr.mxu0 0.0
  %131 = vmatpush1.msra.mxu0 %v28
  %132 = vmatprep.subr.mxu0 0.0
  %133 = vmatpush1.msra.mxu0 %v29
  %134 = vmatprep.subr.mxu0 0.0
  %135 = vmatpush1.msra.mxu0 %v30
  %136 = vmatprep.subr.mxu0 0.0
  %137 = vmatpush1.msra.mxu0 0.0
  %138 = vmatprep.subr.mxu0 0.0
  %139 = vmatpush1.msra.mxu0 0.0
  %140 = vmatprep.subr.mxu0 0.0
  %141 = vmatpush1.msra.mxu0 0.0
  %142 = vmatprep.subr.mxu0 0.0
  %143 = vmatpush1.msra.mxu0 0.0
  %144 = vmatprep.subr.mxu0 0.0
  %145 = vmatpush1.msra.mxu0 0.0
  %146 = vmatprep.subr.mxu0 0.0
  %147 = vmatpush1.msra.mxu0 0.0
  %148 = vmatprep.subr.mxu0 0.0
  %149 = vmatpush1.msra.mxu0 0.0
  %150 = vmatprep.subr.mxu0 0.0
  %151 = vmatpush1.msra.mxu0 0.0
  %152 = vmatprep.subr.mxu0 0.0
  %153 = vmatpush1.msra.mxu0 0.0
  %154 = vmatprep.subr.mxu0 0.0
  %155 = vmatpush1.msra.mxu0 0.0
  %156 = vmatprep.subr.mxu0 0.0
  %157 = vmatpush1.msra.mxu0 0.0
  %158 = vmatprep.subr.mxu0 0.0
  %159 = vmatpush1.msra.mxu0 0.0
  %160 = vmatprep.subr.mxu0 0.0
  %161 = vmatpush1.msra.mxu0 0.0
  %162 = vmatprep.subr.mxu0 0.0
  %163 = vmatpush1.msra.mxu0 0.0
  %164 = vmatprep.subr.mxu0 0.0
  %165 = vmatpush1.msra.mxu0 0.0
  %166 = vmatprep.subr.mxu0 0.0
  %167 = vmatpush1.msra.mxu0 0.0
  %168 = vmatprep.subr.mxu0 0.0
  %169 = vmatpush1.msra.mxu0 0.0
  %170 = vmatprep.subr.mxu0 0.0
  %171 = vmatpush1.msra.mxu0 0.0
  %172 = vmatprep.subr.mxu0 0.0
  %173 = vmatpush1.msra.mxu0 0.0
  %174 = vmatprep.subr.mxu0 0.0
  %175 = vmatpush1.msra.mxu0 0.0
  %176 = vmatprep.subr.mxu0 0.0
  %177 = vmatpush1.msra.mxu0 0.0
  %178 = vmatprep.subr.mxu0 0.0
  %179 = vmatpush1.msra.mxu0 0.0
  %180 = vmatprep.subr.mxu0 0.0
  %181 = vmatpush1.msra.mxu0 0.0
  %182 = vmatprep.subr.mxu0 0.0
  %183 = vmatpush1.msra.mxu0 0.0
  %184 = vmatprep.subr.mxu0 0.0
  %185 = vmatpush1.msra.mxu0 0.0
  %186 = vmatprep.subr.mxu0 0.0
  %187 = vmatpush1.msra.mxu0 0.0
  %188 = vmatprep.subr.mxu0 0.0
  %189 = vmatpush1.msra.mxu0 0.0
  %190 = vmatprep.subr.mxu0 0.0
  %191 = vmatpush1.msra.mxu0 0.0
  %192 = vmatprep.mubr.f32.mxu0 0.0
  %193 = vmatmul.mubr.f32.gmra.mrb[0].mxu0 %v126
  %v194 = vpop.f32.mrb[0].mxu0
  %v195 = vadd.f32 0.0, %v194
  %v196 = vpop.f32.mrb[0].mxu0
  %197 = vdwg.mxu0
  %v199 = vrot.slane %v195, 1
  %v202 = vadd.f32 %v116, %v195
  %v203 = vadd.f32 %v121, %v199
  %v204 = vxor.u32 %v202, 2147483648
  %v205 = vxor.u32 %v203, 2147483648
  %v206 = vmul.f32 %v204, 1.442695
  %v207 = vpow.pop %v206
  %v208 = vmul.f32 %v205, 1.442695
  %v209 = vpow.pop %v208
  %v210 = vadd.f32 %v207, 1.0
  %v211 = vadd.f32 %v209, 1.0
  %v212 = vrcp.pop %v210
  %v213 = vmul.f32 1.0, %v212
  %v214 = vrcp.pop %v211
  %v215 = vmul.f32 1.0, %v214
  %v216 = vtanh.pop %v202
  %v217 = vtanh.pop %v203
  %v218 = vmul.f32 %v213, 0.0
  %v219 = vmul.f32 %v215, 0.0
  %222 = vrot.lane.b32.xlu0 %v216, 32
  %v223 = vpop.permute.xlu0 %222
  %224 = vrot.lane.b32.xlu0 %v217, 32
  %v225 = vpop.permute.xlu0 %224
  %v228 = vmul.f32 %v213, %v223
  %v229 = vmul.f32 %v215, %v225
  %232 = vrot.lane.b32.xlu0 %v228, 32
  %v233 = vpop.permute.xlu0 %232
  %234 = vrot.lane.b32.xlu0 %v229, 32
  %v235 = vpop.permute.xlu0 %234
  %v238 = vadd.f32 %v218, %v233
  %v239 = vadd.f32 %v219, %v235
  %v240 = vtanh.pop %v238
  %v241 = vtanh.pop %v239
  %244 = vrot.lane.b32.xlu0 %v240, 32
  %v245 = vpop.permute.xlu0 %244
  %246 = vrot.lane.b32.xlu0 %v241, 32
  %v247 = vpop.permute.xlu0 %246
  %v250 = vmul.f32 %v213, %v245
  %v251 = vmul.f32 %v215, %v247
  %v254 = vrot.slane %v251, 7
  %vm255 = vcmask 1041409
  %v256 = vsel %vm255, %v254, %v250
  %257 = vrot.lane.b32.xlu0 %v256, 64
  %v258 = vpop.permute.xlu0 %257
  %v259 = vsel %vm124, %v258, 0
  %261 = vmatprep.subr.mxu0 0.0
  %262 = vmatpush1.msra.mxu0 %v27
  %263 = vmatprep.subr.mxu0 0.0
  %264 = vmatpush1.msra.mxu0 %v28
  %265 = vmatprep.subr.mxu0 0.0
  %266 = vmatpush1.msra.mxu0 %v29
  %267 = vmatprep.subr.mxu0 0.0
  %268 = vmatpush1.msra.mxu0 %v30
  %269 = vmatprep.subr.mxu0 0.0
  %270 = vmatpush1.msra.mxu0 0.0
  %271 = vmatprep.subr.mxu0 0.0
  %272 = vmatpush1.msra.mxu0 0.0
  %273 = vmatprep.subr.mxu0 0.0
  %274 = vmatpush1.msra.mxu0 0.0
  %275 = vmatprep.subr.mxu0 0.0
  %276 = vmatpush1.msra.mxu0 0.0
  %277 = vmatprep.subr.mxu0 0.0
  %278 = vmatpush1.msra.mxu0 0.0
  %279 = vmatprep.subr.mxu0 0.0
  %280 = vmatpush1.msra.mxu0 0.0
  %281 = vmatprep.subr.mxu0 0.0
  %282 = vmatpush1.msra.mxu0 0.0
  %283 = vmatprep.subr.mxu0 0.0
  %284 = vmatpush1.msra.mxu0 0.0
  %285 = vmatprep.subr.mxu0 0.0
  %286 = vmatpush1.msra.mxu0 0.0
  %287 = vmatprep.subr.mxu0 0.0
  %288 = vmatpush1.msra.mxu0 0.0
  %289 = vmatprep.subr.mxu0 0.0
  %290 = vmatpush1.msra.mxu0 0.0
  %291 = vmatprep.subr.mxu0 0.0
  %292 = vmatpush1.msra.mxu0 0.0
  %293 = vmatprep.subr.mxu0 0.0
  %294 = vmatpush1.msra.mxu0 0.0
  %295 = vmatprep.subr.mxu0 0.0
  %296 = vmatpush1.msra.mxu0 0.0
  %297 = vmatprep.subr.mxu0 0.0
  %298 = vmatpush1.msra.mxu0 0.0
  %299 = vmatprep.subr.mxu0 0.0
  %300 = vmatpush1.msra.mxu0 0.0
  %301 = vmatprep.subr.mxu0 0.0
  %302 = vmatpush1.msra.mxu0 0.0
  %303 = vmatprep.subr.mxu0 0.0
  %304 = vmatpush1.msra.mxu0 0.0
  %305 = vmatprep.subr.mxu0 0.0
  %306 = vmatpush1.msra.mxu0 0.0
  %307 = vmatprep.subr.mxu0 0.0
  %308 = vmatpush1.msra.mxu0 0.0
  %309 = vmatprep.subr.mxu0 0.0
  %310 = vmatpush1.msra.mxu0 0.0
  %311 = vmatprep.subr.mxu0 0.0
  %312 = vmatpush1.msra.mxu0 0.0
  %313 = vmatprep.subr.mxu0 0.0
  %314 = vmatpush1.msra.mxu0 0.0
  %315 = vmatprep.subr.mxu0 0.0
  %316 = vmatpush1.msra.mxu0 0.0
  %317 = vmatprep.subr.mxu0 0.0
  %318 = vmatpush1.msra.mxu0 0.0
  %319 = vmatprep.subr.mxu0 0.0
  %320 = vmatpush1.msra.mxu0 0.0
  %321 = vmatprep.subr.mxu0 0.0
  %322 = vmatpush1.msra.mxu0 0.0
  %323 = vmatprep.subr.mxu0 0.0
  %324 = vmatpush1.msra.mxu0 0.0
  %325 = vmatprep.mubr.f32.mxu0 0.0
  %326 = vmatmul.mubr.f32.gmra.mrb[0].mxu0 %v259
  %v327 = vpop.f32.mrb[0].mxu0
  %v328 = vadd.f32 0.0, %v327
  %v329 = vpop.f32.mrb[0].mxu0
  %330 = vdwg.mxu0
  %v332 = vrot.slane %v328, 7
  %v335 = vadd.f32 %v116, %v332
  %v336 = vadd.f32 %v121, %v328
  %v337 = vxor.u32 %v335, 2147483648
  %v338 = vxor.u32 %v336, 2147483648
  %v339 = vmul.f32 %v337, 1.442695
  %v340 = vpow.pop %v339
  %v341 = vmul.f32 %v338, 1.442695
  %v342 = vpow.pop %v341
  %v343 = vadd.f32 %v340, 1.0
  %v344 = vadd.f32 %v342, 1.0
  %v345 = vrcp.pop %v343
  %v346 = vmul.f32 1.0, %v345
  %v347 = vrcp.pop %v344
  %v348 = vmul.f32 1.0, %v347
  %v349 = vtanh.pop %v335
  %v350 = vtanh.pop %v336
  %v353 = vrot.slane %v238, 7
  %v354 = vrot.slane %v239, 7
  %v357 = vmul.f32 %v346, %v353
  %v358 = vmul.f32 %v348, %v354
  %361 = vrot.lane.b32.xlu0 %v349, 32
  %v362 = vpop.permute.xlu0 %361
  %363 = vrot.lane.b32.xlu0 %v350, 32
  %v364 = vpop.permute.xlu0 %363
  %v367 = vmul.f32 %v346, %v362
  %v368 = vmul.f32 %v348, %v364
  %371 = vrot.lane.b32.xlu0 %v367, 32
  %v372 = vpop.permute.xlu0 %371
  %373 = vrot.lane.b32.xlu0 %v368, 32
  %v374 = vpop.permute.xlu0 %373
  %v377 = vadd.f32 %v357, %v372
  %v378 = vadd.f32 %v358, %v374
  %v379 = vtanh.pop %v377
  %v380 = vtanh.pop %v378
  %383 = vrot.lane.b32.xlu0 %v379, 32
  %v384 = vpop.permute.xlu0 %383
  %385 = vrot.lane.b32.xlu0 %v380, 32
  %v386 = vpop.permute.xlu0 %385
  %v389 = vmul.f32 %v346, %v384
  %v390 = vmul.f32 %v348, %v386
  %v393 = vrot.slane %v389, 1
  %v394 = vsel %vm255, %v390, %v393
  %395 = vrot.lane.b32.xlu0 %v394, 64
  %v396 = vpop.permute.xlu0 %395
  %v397 = vsel %vm124, %v396, 0
  %399 = vmatprep.subr.mxu0 0.0
  %400 = vmatpush1.msra.mxu0 %v27
  %401 = vmatprep.subr.mxu0 0.0
  %402 = vmatpush1.msra.mxu0 %v28
  %403 = vmatprep.subr.mxu0 0.0
  %404 = vmatpush1.msra.mxu0 %v29
  %405 = vmatprep.subr.mxu0 0.0
  %406 = vmatpush1.msra.mxu0 %v30
  %407 = vmatprep.subr.mxu0 0.0
  %408 = vmatpush1.msra.mxu0 0.0
  %409 = vmatprep.subr.mxu0 0.0
  %410 = vmatpush1.msra.mxu0 0.0
  %411 = vmatprep.subr.mxu0 0.0
  %412 = vmatpush1.msra.mxu0 0.0
  %413 = vmatprep.subr.mxu0 0.0
  %414 = vmatpush1.msra.mxu0 0.0
  %415 = vmatprep.subr.mxu0 0.0
  %416 = vmatpush1.msra.mxu0 0.0
  %417 = vmatprep.subr.mxu0 0.0
  %418 = vmatpush1.msra.mxu0 0.0
  %419 = vmatprep.subr.mxu0 0.0
  %420 = vmatpush1.msra.mxu0 0.0
  %421 = vmatprep.subr.mxu0 0.0
  %422 = vmatpush1.msra.mxu0 0.0
  %423 = vmatprep.subr.mxu0 0.0
  %424 = vmatpush1.msra.mxu0 0.0
  %425 = vmatprep.subr.mxu0 0.0
  %426 = vmatpush1.msra.mxu0 0.0
  %427 = vmatprep.subr.mxu0 0.0
  %428 = vmatpush1.msra.mxu0 0.0
  %429 = vmatprep.subr.mxu0 0.0
  %430 = vmatpush1.msra.mxu0 0.0
  %431 = vmatprep.subr.mxu0 0.0
  %432 = vmatpush1.msra.mxu0 0.0
  %433 = vmatprep.subr.mxu0 0.0
  %434 = vmatpush1.msra.mxu0 0.0
  %435 = vmatprep.subr.mxu0 0.0
  %436 = vmatpush1.msra.mxu0 0.0
  %437 = vmatprep.subr.mxu0 0.0
  %438 = vmatpush1.msra.mxu0 0.0
  %439 = vmatprep.subr.mxu0 0.0
  %440 = vmatpush1.msra.mxu0 0.0
  %441 = vmatprep.subr.mxu0 0.0
  %442 = vmatpush1.msra.mxu0 0.0
  %443 = vmatprep.subr.mxu0 0.0
  %444 = vmatpush1.msra.mxu0 0.0
  %445 = vmatprep.subr.mxu0 0.0
  %446 = vmatpush1.msra.mxu0 0.0
  %447 = vmatprep.subr.mxu0 0.0
  %448 = vmatpush1.msra.mxu0 0.0
  %449 = vmatprep.subr.mxu0 0.0
  %450 = vmatpush1.msra.mxu0 0.0
  %451 = vmatprep.subr.mxu0 0.0
  %452 = vmatpush1.msra.mxu0 0.0
  %453 = vmatprep.subr.mxu0 0.0
  %454 = vmatpush1.msra.mxu0 0.0
  %455 = vmatprep.subr.mxu0 0.0
  %456 = vmatpush1.msra.mxu0 0.0
  %457 = vmatprep.subr.mxu0 0.0
  %458 = vmatpush1.msra.mxu0 0.0
  %459 = vmatprep.subr.mxu0 0.0
  %460 = vmatpush1.msra.mxu0 0.0
  %461 = vmatprep.subr.mxu0 0.0
  %462 = vmatpush1.msra.mxu0 0.0
  %463 = vmatprep.mubr.f32.mxu0 0.0
  %464 = vmatmul.mubr.f32.gmra.mrb[0].mxu0 %v397
  %v465 = vpop.f32.mrb[0].mxu0
  %v466 = vadd.f32 0.0, %v465
  %v467 = vpop.f32.mrb[0].mxu0
  %468 = vdwg.mxu0
  %v470 = vrot.slane %v466, 6
  %v471 = vrot.slane %v466, 7
  %v474 = vadd.f32 %v116, %v470
  %v475 = vadd.f32 %v121, %v471
  %v476 = vxor.u32 %v474, 2147483648
  %v477 = vxor.u32 %v475, 2147483648
  %v478 = vmul.f32 %v476, 1.442695
  %v479 = vpow.pop %v478
  %v480 = vmul.f32 %v477, 1.442695
  %v481 = vpow.pop %v480
  %v482 = vadd.f32 %v479, 1.0
  %v483 = vadd.f32 %v481, 1.0
  %v484 = vrcp.pop %v482
  %v485 = vmul.f32 1.0, %v484
  %v486 = vrcp.pop %v483
  %v487 = vmul.f32 1.0, %v486
  %v488 = vtanh.pop %v474
  %v489 = vtanh.pop %v475
  %v492 = vrot.slane %v377, 7
  %v493 = vrot.slane %v378, 7
  %v496 = vmul.f32 %v485, %v492
  %v497 = vmul.f32 %v487, %v493
  %500 = vrot.lane.b32.xlu0 %v488, 32
  %v501 = vpop.permute.xlu0 %500
  %502 = vrot.lane.b32.xlu0 %v489, 32
  %v503 = vpop.permute.xlu0 %502
  %v506 = vmul.f32 %v485, %v501
  %v507 = vmul.f32 %v487, %v503
  %510 = vrot.lane.b32.xlu0 %v506, 32
  %v511 = vpop.permute.xlu0 %510
  %512 = vrot.lane.b32.xlu0 %v507, 32
  %v513 = vpop.permute.xlu0 %512
  %v516 = vadd.f32 %v496, %v511
  %v517 = vadd.f32 %v497, %v513
  %v518 = vtanh.pop %v516
  %v519 = vtanh.pop %v517
  %522 = vrot.lane.b32.xlu0 %v518, 32
  %v523 = vpop.permute.xlu0 %522
  %524 = vrot.lane.b32.xlu0 %v519, 32
  %v525 = vpop.permute.xlu0 %524
  %v528 = vmul.f32 %v485, %v523
  %v529 = vmul.f32 %v487, %v525
  %v532 = vrot.slane %v528, 2
  %v533 = vrot.slane %v529, 1
  %v534 = vsel %vm255, %v533, %v532
  %535 = vrot.lane.b32.xlu0 %v534, 64
  %v536 = vpop.permute.xlu0 %535
  %v537 = vsel %vm124, %v536, 0
  %539 = vmatprep.subr.mxu0 0.0
  %540 = vmatpush1.msra.mxu0 %v27
  %541 = vmatprep.subr.mxu0 0.0
  %542 = vmatpush1.msra.mxu0 %v28
  %543 = vmatprep.subr.mxu0 0.0
  %544 = vmatpush1.msra.mxu0 %v29
  %545 = vmatprep.subr.mxu0 0.0
  %546 = vmatpush1.msra.mxu0 %v30
  %547 = vmatprep.subr.mxu0 0.0
  %548 = vmatpush1.msra.mxu0 0.0
  %549 = vmatprep.subr.mxu0 0.0
  %550 = vmatpush1.msra.mxu0 0.0
  %551 = vmatprep.subr.mxu0 0.0
  %552 = vmatpush1.msra.mxu0 0.0
  %553 = vmatprep.subr.mxu0 0.0
  %554 = vmatpush1.msra.mxu0 0.0
  %555 = vmatprep.subr.mxu0 0.0
  %556 = vmatpush1.msra.mxu0 0.0
  %557 = vmatprep.subr.mxu0 0.0
  %558 = vmatpush1.msra.mxu0 0.0
  %559 = vmatprep.subr.mxu0 0.0
  %560 = vmatpush1.msra.mxu0 0.0
  %561 = vmatprep.subr.mxu0 0.0
  %562 = vmatpush1.msra.mxu0 0.0
  %563 = vmatprep.subr.mxu0 0.0
  %564 = vmatpush1.msra.mxu0 0.0
  %565 = vmatprep.subr.mxu0 0.0
  %566 = vmatpush1.msra.mxu0 0.0
  %567 = vmatprep.subr.mxu0 0.0
  %568 = vmatpush1.msra.mxu0 0.0
  %569 = vmatprep.subr.mxu0 0.0
  %570 = vmatpush1.msra.mxu0 0.0
  %571 = vmatprep.subr.mxu0 0.0
  %572 = vmatpush1.msra.mxu0 0.0
  %573 = vmatprep.subr.mxu0 0.0
  %574 = vmatpush1.msra.mxu0 0.0
  %575 = vmatprep.subr.mxu0 0.0
  %576 = vmatpush1.msra.mxu0 0.0
  %577 = vmatprep.subr.mxu0 0.0
  %578 = vmatpush1.msra.mxu0 0.0
  %579 = vmatprep.subr.mxu0 0.0
  %580 = vmatpush1.msra.mxu0 0.0
  %581 = vmatprep.subr.mxu0 0.0
  %582 = vmatpush1.msra.mxu0 0.0
  %583 = vmatprep.subr.mxu0 0.0
  %584 = vmatpush1.msra.mxu0 0.0
  %585 = vmatprep.subr.mxu0 0.0
  %586 = vmatpush1.msra.mxu0 0.0
  %587 = vmatprep.subr.mxu0 0.0
  %588 = vmatpush1.msra.mxu0 0.0
  %589 = vmatprep.subr.mxu0 0.0
  %590 = vmatpush1.msra.mxu0 0.0
  %591 = vmatprep.subr.mxu0 0.0
  %592 = vmatpush1.msra.mxu0 0.0
  %593 = vmatprep.subr.mxu0 0.0
  %594 = vmatpush1.msra.mxu0 0.0
  %595 = vmatprep.subr.mxu0 0.0
  %596 = vmatpush1.msra.mxu0 0.0
  %597 = vmatprep.subr.mxu0 0.0
  %598 = vmatpush1.msra.mxu0 0.0
  %599 = vmatprep.subr.mxu0 0.0
  %600 = vmatpush1.msra.mxu0 0.0
  %601 = vmatprep.subr.mxu0 0.0
  %602 = vmatpush1.msra.mxu0 0.0
  %603 = vmatprep.mubr.f32.mxu0 0.0
  %604 = vmatmul.mubr.f32.gmra.mrb[0].mxu0 %v537
  %v605 = vpop.f32.mrb[0].mxu0
  %v606 = vadd.f32 0.0, %v605
  %v607 = vpop.f32.mrb[0].mxu0
  %608 = vdwg.mxu0
  %v610 = vrot.slane %v606, 5
  %v611 = vrot.slane %v606, 6
  %v614 = vadd.f32 %v116, %v610
  %v615 = vadd.f32 %v121, %v611
  %v616 = vxor.u32 %v614, 2147483648
  %v617 = vxor.u32 %v615, 2147483648
  %v618 = vmul.f32 %v616, 1.442695
  %v619 = vpow.pop %v618
  %v620 = vmul.f32 %v617, 1.442695
  %v621 = vpow.pop %v620
  %v622 = vadd.f32 %v619, 1.0
  %v623 = vadd.f32 %v621, 1.0
  %v624 = vrcp.pop %v622
  %v625 = vmul.f32 1.0, %v624
  %v626 = vrcp.pop %v623
  %v627 = vmul.f32 1.0, %v626
  %v628 = vtanh.pop %v614
  %v629 = vtanh.pop %v615
  %v632 = vrot.slane %v516, 7
  %v633 = vrot.slane %v517, 7
  %v636 = vmul.f32 %v625, %v632
  %v637 = vmul.f32 %v627, %v633
  %640 = vrot.lane.b32.xlu0 %v628, 32
  %v641 = vpop.permute.xlu0 %640
  %642 = vrot.lane.b32.xlu0 %v629, 32
  %v643 = vpop.permute.xlu0 %642
  %v646 = vmul.f32 %v625, %v641
  %v647 = vmul.f32 %v627, %v643
  %650 = vrot.lane.b32.xlu0 %v646, 32
  %v651 = vpop.permute.xlu0 %650
  %652 = vrot.lane.b32.xlu0 %v647, 32
  %v653 = vpop.permute.xlu0 %652
  %v656 = vadd.f32 %v636, %v651
  %v657 = vadd.f32 %v637, %v653
  %v658 = vtanh.pop %v656
  %v659 = vtanh.pop %v657
  %662 = vrot.lane.b32.xlu0 %v658, 32
  %v663 = vpop.permute.xlu0 %662
  %664 = vrot.lane.b32.xlu0 %v659, 32
  %v665 = vpop.permute.xlu0 %664
  %v668 = vmul.f32 %v625, %v663
  %v669 = vmul.f32 %v627, %v665
  %v672 = vrot.slane %v668, 3
  %v673 = vrot.slane %v669, 2
  %v674 = vsel %vm255, %v673, %v672
  %675 = vrot.lane.b32.xlu0 %v674, 64
  %v676 = vpop.permute.xlu0 %675
  %v677 = vsel %vm124, %v676, 0
  %679 = vmatprep.subr.mxu0 0.0
  %680 = vmatpush1.msra.mxu0 %v27
  %681 = vmatprep.subr.mxu0 0.0
  %682 = vmatpush1.msra.mxu0 %v28
  %683 = vmatprep.subr.mxu0 0.0
  %684 = vmatpush1.msra.mxu0 %v29
  %685 = vmatprep.subr.mxu0 0.0
  %686 = vmatpush1.msra.mxu0 %v30
  %687 = vmatprep.subr.mxu0 0.0
  %688 = vmatpush1.msra.mxu0 0.0
  %689 = vmatprep.subr.mxu0 0.0
  %690 = vmatpush1.msra.mxu0 0.0
  %691 = vmatprep.subr.mxu0 0.0
  %692 = vmatpush1.msra.mxu0 0.0
  %693 = vmatprep.subr.mxu0 0.0
  %694 = vmatpush1.msra.mxu0 0.0
  %695 = vmatprep.subr.mxu0 0.0
  %696 = vmatpush1.msra.mxu0 0.0
  %697 = vmatprep.subr.mxu0 0.0
  %698 = vmatpush1.msra.mxu0 0.0
  %699 = vmatprep.subr.mxu0 0.0
  %700 = vmatpush1.msra.mxu0 0.0
  %701 = vmatprep.subr.mxu0 0.0
  %702 = vmatpush1.msra.mxu0 0.0
  %703 = vmatprep.subr.mxu0 0.0
  %704 = vmatpush1.msra.mxu0 0.0
  %705 = vmatprep.subr.mxu0 0.0
  %706 = vmatpush1.msra.mxu0 0.0
  %707 = vmatprep.subr.mxu0 0.0
  %708 = vmatpush1.msra.mxu0 0.0
  %709 = vmatprep.subr.mxu0 0.0
  %710 = vmatpush1.msra.mxu0 0.0
  %711 = vmatprep.subr.mxu0 0.0
  %712 = vmatpush1.msra.mxu0 0.0
  %713 = vmatprep.subr.mxu0 0.0
  %714 = vmatpush1.msra.mxu0 0.0
  %715 = vmatprep.subr.mxu0 0.0
  %716 = vmatpush1.msra.mxu0 0.0
  %717 = vmatprep.subr.mxu0 0.0
  %718 = vmatpush1.msra.mxu0 0.0
  %719 = vmatprep.subr.mxu0 0.0
  %720 = vmatpush1.msra.mxu0 0.0
  %721 = vmatprep.subr.mxu0 0.0
  %722 = vmatpush1.msra.mxu0 0.0
  %723 = vmatprep.subr.mxu0 0.0
  %724 = vmatpush1.msra.mxu0 0.0
  %725 = vmatprep.subr.mxu0 0.0
  %726 = vmatpush1.msra.mxu0 0.0
  %727 = vmatprep.subr.mxu0 0.0
  %728 = vmatpush1.msra.mxu0 0.0
  %729 = vmatprep.subr.mxu0 0.0
  %730 = vmatpush1.msra.mxu0 0.0
  %731 = vmatprep.subr.mxu0 0.0
  %732 = vmatpush1.msra.mxu0 0.0
  %733 = vmatprep.subr.mxu0 0.0
  %734 = vmatpush1.msra.mxu0 0.0
  %735 = vmatprep.subr.mxu0 0.0
  %736 = vmatpush1.msra.mxu0 0.0
  %737 = vmatprep.subr.mxu0 0.0
  %738 = vmatpush1.msra.mxu0 0.0
  %739 = vmatprep.subr.mxu0 0.0
  %740 = vmatpush1.msra.mxu0 0.0
  %741 = vmatprep.subr.mxu0 0.0
  %742 = vmatpush1.msra.mxu0 0.0
  %743 = vmatprep.mubr.f32.mxu0 0.0
  %744 = vmatmul.mubr.f32.gmra.mrb[0].mxu0 %v677
  %v745 = vpop.f32.mrb[0].mxu0
  %v746 = vadd.f32 0.0, %v745
  %v747 = vpop.f32.mrb[0].mxu0
  %748 = vdwg.mxu0
  %v750 = vrot.slane %v746, 4
  %v751 = vrot.slane %v746, 5
  %v754 = vadd.f32 %v116, %v750
  %v755 = vadd.f32 %v121, %v751
  %v756 = vxor.u32 %v754, 2147483648
  %v757 = vxor.u32 %v755, 2147483648
  %v758 = vmul.f32 %v756, 1.442695
  %v759 = vpow.pop %v758
  %v760 = vmul.f32 %v757, 1.442695
  %v761 = vpow.pop %v760
  %v762 = vadd.f32 %v759, 1.0
  %v763 = vadd.f32 %v761, 1.0
  %v764 = vrcp.pop %v762
  %v765 = vmul.f32 1.0, %v764
  %v766 = vrcp.pop %v763
  %v767 = vmul.f32 1.0, %v766
  %v768 = vtanh.pop %v754
  %v769 = vtanh.pop %v755
  %v772 = vrot.slane %v656, 7
  %v773 = vrot.slane %v657, 7
  %v776 = vmul.f32 %v765, %v772
  %v777 = vmul.f32 %v767, %v773
  %780 = vrot.lane.b32.xlu0 %v768, 32
  %v781 = vpop.permute.xlu0 %780
  %782 = vrot.lane.b32.xlu0 %v769, 32
  %v783 = vpop.permute.xlu0 %782
  %v786 = vmul.f32 %v765, %v781
  %v787 = vmul.f32 %v767, %v783
  %790 = vrot.lane.b32.xlu0 %v786, 32
  %v791 = vpop.permute.xlu0 %790
  %792 = vrot.lane.b32.xlu0 %v787, 32
  %v793 = vpop.permute.xlu0 %792
  %v796 = vadd.f32 %v776, %v791
  %v797 = vadd.f32 %v777, %v793
  %v798 = vtanh.pop %v796
  %v799 = vtanh.pop %v797
  %802 = vrot.lane.b32.xlu0 %v798, 32
  %v803 = vpop.permute.xlu0 %802
  %804 = vrot.lane.b32.xlu0 %v799, 32
  %v805 = vpop.permute.xlu0 %804
  %v808 = vmul.f32 %v765, %v803
  %v809 = vmul.f32 %v767, %v805
  %v812 = vrot.slane %v808, 4
  %v813 = vrot.slane %v809, 3
  %v814 = vsel %vm255, %v813, %v812
  %815 = vrot.lane.b32.xlu0 %v814, 64
  %v816 = vpop.permute.xlu0 %815
  %v817 = vsel %vm124, %v816, 0
  %819 = vmatprep.subr.mxu0 0.0
  %820 = vmatpush1.msra.mxu0 %v27
  %821 = vmatprep.subr.mxu0 0.0
  %822 = vmatpush1.msra.mxu0 %v28
  %823 = vmatprep.subr.mxu0 0.0
  %824 = vmatpush1.msra.mxu0 %v29
  %825 = vmatprep.subr.mxu0 0.0
  %826 = vmatpush1.msra.mxu0 %v30
  %827 = vmatprep.subr.mxu0 0.0
  %828 = vmatpush1.msra.mxu0 0.0
  %829 = vmatprep.subr.mxu0 0.0
  %830 = vmatpush1.msra.mxu0 0.0
  %831 = vmatprep.subr.mxu0 0.0
  %832 = vmatpush1.msra.mxu0 0.0
  %833 = vmatprep.subr.mxu0 0.0
  %834 = vmatpush1.msra.mxu0 0.0
  %835 = vmatprep.subr.mxu0 0.0
  %836 = vmatpush1.msra.mxu0 0.0
  %837 = vmatprep.subr.mxu0 0.0
  %838 = vmatpush1.msra.mxu0 0.0
  %839 = vmatprep.subr.mxu0 0.0
  %840 = vmatpush1.msra.mxu0 0.0
  %841 = vmatprep.subr.mxu0 0.0
  %842 = vmatpush1.msra.mxu0 0.0
  %843 = vmatprep.subr.mxu0 0.0
  %844 = vmatpush1.msra.mxu0 0.0
  %845 = vmatprep.subr.mxu0 0.0
  %846 = vmatpush1.msra.mxu0 0.0
  %847 = vmatprep.subr.mxu0 0.0
  %848 = vmatpush1.msra.mxu0 0.0
  %849 = vmatprep.subr.mxu0 0.0
  %850 = vmatpush1.msra.mxu0 0.0
  %851 = vmatprep.subr.mxu0 0.0
  %852 = vmatpush1.msra.mxu0 0.0
  %853 = vmatprep.subr.mxu0 0.0
  %854 = vmatpush1.msra.mxu0 0.0
  %855 = vmatprep.subr.mxu0 0.0
  %856 = vmatpush1.msra.mxu0 0.0
  %857 = vmatprep.subr.mxu0 0.0
  %858 = vmatpush1.msra.mxu0 0.0
  %859 = vmatprep.subr.mxu0 0.0
  %860 = vmatpush1.msra.mxu0 0.0
  %861 = vmatprep.subr.mxu0 0.0
  %862 = vmatpush1.msra.mxu0 0.0
  %863 = vmatprep.subr.mxu0 0.0
  %864 = vmatpush1.msra.mxu0 0.0
  %865 = vmatprep.subr.mxu0 0.0
  %866 = vmatpush1.msra.mxu0 0.0
  %867 = vmatprep.subr.mxu0 0.0
  %868 = vmatpush1.msra.mxu0 0.0
  %869 = vmatprep.subr.mxu0 0.0
  %870 = vmatpush1.msra.mxu0 0.0
  %871 = vmatprep.subr.mxu0 0.0
  %872 = vmatpush1.msra.mxu0 0.0
  %873 = vmatprep.subr.mxu0 0.0
  %874 = vmatpush1.msra.mxu0 0.0
  %875 = vmatprep.subr.mxu0 0.0
  %876 = vmatpush1.msra.mxu0 0.0
  %877 = vmatprep.subr.mxu0 0.0
  %878 = vmatpush1.msra.mxu0 0.0
  %879 = vmatprep.subr.mxu0 0.0
  %880 = vmatpush1.msra.mxu0 0.0
  %881 = vmatprep.subr.mxu0 0.0
  %882 = vmatpush1.msra.mxu0 0.0
  %883 = vmatprep.mubr.f32.mxu0 0.0
  %884 = vmatmul.mubr.f32.gmra.mrb[0].mxu0 %v817
  %v885 = vpop.f32.mrb[0].mxu0
  %v886 = vadd.f32 0.0, %v885
  %v887 = vpop.f32.mrb[0].mxu0
  %888 = vdwg.mxu0
  %v890 = vrot.slane %v886, 3
  %v891 = vrot.slane %v886, 4
  %v894 = vadd.f32 %v116, %v890
  %v895 = vadd.f32 %v121, %v891
  %v896 = vxor.u32 %v894, 2147483648
  %v897 = vxor.u32 %v895, 2147483648
  %v898 = vmul.f32 %v896, 1.442695
  %v899 = vpow.pop %v898
  %v900 = vmul.f32 %v897, 1.442695
  %v901 = vpow.pop %v900
  %v902 = vadd.f32 %v899, 1.0
  %v903 = vadd.f32 %v901, 1.0
  %v904 = vrcp.pop %v902
  %v905 = vmul.f32 1.0, %v904
  %v906 = vrcp.pop %v903
  %v907 = vmul.f32 1.0, %v906
  %v908 = vtanh.pop %v894
  %v909 = vtanh.pop %v895
  %v912 = vrot.slane %v796, 7
  %v913 = vrot.slane %v797, 7
  %v916 = vmul.f32 %v905, %v912
  %v917 = vmul.f32 %v907, %v913
  %920 = vrot.lane.b32.xlu0 %v908, 32
  %v921 = vpop.permute.xlu0 %920
  %922 = vrot.lane.b32.xlu0 %v909, 32
  %v923 = vpop.permute.xlu0 %922
  %v926 = vmul.f32 %v905, %v921
  %v927 = vmul.f32 %v907, %v923
  %930 = vrot.lane.b32.xlu0 %v926, 32
  %v931 = vpop.permute.xlu0 %930
  %932 = vrot.lane.b32.xlu0 %v927, 32
  %v933 = vpop.permute.xlu0 %932
  %v936 = vadd.f32 %v916, %v931
  %v937 = vadd.f32 %v917, %v933
  %v938 = vtanh.pop %v936
  %v939 = vtanh.pop %v937
  %942 = vrot.lane.b32.xlu0 %v938, 32
  %v943 = vpop.permute.xlu0 %942
  %944 = vrot.lane.b32.xlu0 %v939, 32
  %v945 = vpop.permute.xlu0 %944
  %v948 = vmul.f32 %v905, %v943
  %v949 = vmul.f32 %v907, %v945
  %v952 = vrot.slane %v948, 5
  %v953 = vrot.slane %v949, 4
  %v954 = vsel %vm255, %v953, %v952
  %955 = vrot.lane.b32.xlu0 %v954, 64
  %v956 = vpop.permute.xlu0 %955
  %v957 = vsel %vm124, %v956, 0
  %959 = vmatprep.subr.mxu0 0.0
  %960 = vmatpush1.msra.mxu0 %v27
  %961 = vmatprep.subr.mxu0 0.0
  %962 = vmatpush1.msra.mxu0 %v28
  %963 = vmatprep.subr.mxu0 0.0
  %964 = vmatpush1.msra.mxu0 %v29
  %965 = vmatprep.subr.mxu0 0.0
  %966 = vmatpush1.msra.mxu0 %v30
  %967 = vmatprep.subr.mxu0 0.0
  %968 = vmatpush1.msra.mxu0 0.0
  %969 = vmatprep.subr.mxu0 0.0
  %970 = vmatpush1.msra.mxu0 0.0
  %971 = vmatprep.subr.mxu0 0.0
  %972 = vmatpush1.msra.mxu0 0.0
  %973 = vmatprep.subr.mxu0 0.0
  %974 = vmatpush1.msra.mxu0 0.0
  %975 = vmatprep.subr.mxu0 0.0
  %976 = vmatpush1.msra.mxu0 0.0
  %977 = vmatprep.subr.mxu0 0.0
  %978 = vmatpush1.msra.mxu0 0.0
  %979 = vmatprep.subr.mxu0 0.0
  %980 = vmatpush1.msra.mxu0 0.0
  %981 = vmatprep.subr.mxu0 0.0
  %982 = vmatpush1.msra.mxu0 0.0
  %983 = vmatprep.subr.mxu0 0.0
  %984 = vmatpush1.msra.mxu0 0.0
  %985 = vmatprep.subr.mxu0 0.0
  %986 = vmatpush1.msra.mxu0 0.0
  %987 = vmatprep.subr.mxu0 0.0
  %988 = vmatpush1.msra.mxu0 0.0
  %989 = vmatprep.subr.mxu0 0.0
  %990 = vmatpush1.msra.mxu0 0.0
  %991 = vmatprep.subr.mxu0 0.0
  %992 = vmatpush1.msra.mxu0 0.0
  %993 = vmatprep.subr.mxu0 0.0
  %994 = vmatpush1.msra.mxu0 0.0
  %995 = vmatprep.subr.mxu0 0.0
  %996 = vmatpush1.msra.mxu0 0.0
  %997 = vmatprep.subr.mxu0 0.0
  %998 = vmatpush1.msra.mxu0 0.0
  %999 = vmatprep.subr.mxu0 0.0
  %1000 = vmatpush1.msra.mxu0 0.0
  %1001 = vmatprep.subr.mxu0 0.0
  %1002 = vmatpush1.msra.mxu0 0.0
  %1003 = vmatprep.subr.mxu0 0.0
  %1004 = vmatpush1.msra.mxu0 0.0
  %1005 = vmatprep.subr.mxu0 0.0
  %1006 = vmatpush1.msra.mxu0 0.0
  %1007 = vmatprep.subr.mxu0 0.0
  %1008 = vmatpush1.msra.mxu0 0.0
  %1009 = vmatprep.subr.mxu0 0.0
  %1010 = vmatpush1.msra.mxu0 0.0
  %1011 = vmatprep.subr.mxu0 0.0
  %1012 = vmatpush1.msra.mxu0 0.0
  %1013 = vmatprep.subr.mxu0 0.0
  %1014 = vmatpush1.msra.mxu0 0.0
  %1015 = vmatprep.subr.mxu0 0.0
  %1016 = vmatpush1.msra.mxu0 0.0
  %1017 = vmatprep.subr.mxu0 0.0
  %1018 = vmatpush1.msra.mxu0 0.0
  %1019 = vmatprep.subr.mxu0 0.0
  %1020 = vmatpush1.msra.mxu0 0.0
  %1021 = vmatprep.subr.mxu0 0.0
  %1022 = vmatpush1.msra.mxu0 0.0
  %1023 = vmatprep.mubr.f32.mxu0 0.0
  %1024 = vmatmul.mubr.f32.gmra.mrb[0].mxu0 %v957
  %v1025 = vpop.f32.mrb[0].mxu0
  %v1026 = vadd.f32 0.0, %v1025
  %v1027 = vpop.f32.mrb[0].mxu0
  %1028 = vdwg.mxu0
  %v1030 = vrot.slane %v1026, 2
  %v1031 = vrot.slane %v1026, 3
  %v1034 = vadd.f32 %v116, %v1030
  %v1035 = vadd.f32 %v121, %v1031
  %v1036 = vxor.u32 %v1034, 2147483648
  %v1037 = vxor.u32 %v1035, 2147483648
  %v1038 = vmul.f32 %v1036, 1.442695
  %v1039 = vpow.pop %v1038
  %v1040 = vmul.f32 %v1037, 1.442695
  %v1041 = vpow.pop %v1040
  %v1042 = vadd.f32 %v1039, 1.0
  %v1043 = vadd.f32 %v1041, 1.0
  %v1044 = vrcp.pop %v1042
  %v1045 = vmul.f32 1.0, %v1044
  %v1046 = vrcp.pop %v1043
  %v1047 = vmul.f32 1.0, %v1046
  %v1048 = vtanh.pop %v1034
  %v1049 = vtanh.pop %v1035
  %v1052 = vrot.slane %v936, 7
  %v1053 = vrot.slane %v937, 7
  %v1056 = vmul.f32 %v1045, %v1052
  %v1057 = vmul.f32 %v1047, %v1053
  %1060 = vrot.lane.b32.xlu0 %v1048, 32
  %v1061 = vpop.permute.xlu0 %1060
  %1062 = vrot.lane.b32.xlu0 %v1049, 32
  %v1063 = vpop.permute.xlu0 %1062
  %v1066 = vmul.f32 %v1045, %v1061
  %v1067 = vmul.f32 %v1047, %v1063
  %1070 = vrot.lane.b32.xlu0 %v1066, 32
  %v1071 = vpop.permute.xlu0 %1070
  %1072 = vrot.lane.b32.xlu0 %v1067, 32
  %v1073 = vpop.permute.xlu0 %1072
  %v1076 = vadd.f32 %v1056, %v1071
  %v1077 = vadd.f32 %v1057, %v1073
  %v1078 = vtanh.pop %v1076
  %v1079 = vtanh.pop %v1077
  %1082 = vrot.lane.b32.xlu0 %v1078, 32
  %v1083 = vpop.permute.xlu0 %1082
  %1084 = vrot.lane.b32.xlu0 %v1079, 32
  %v1085 = vpop.permute.xlu0 %1084
  %v1088 = vmul.f32 %v1045, %v1083
  %v1089 = vmul.f32 %v1047, %v1085
  %v1092 = vrot.slane %v1088, 6
  %v1093 = vrot.slane %v1089, 5
  %v1094 = vsel %vm255, %v1093, %v1092
  %1095 = vrot.lane.b32.xlu0 %v1094, 64
  %v1096 = vpop.permute.xlu0 %1095
  %v1097 = vsel %vm124, %v1096, 0
  %1099 = vmatprep.subr.mxu0 0.0
  %1100 = vmatpush1.msra.mxu0 %v27
  %1101 = vmatprep.subr.mxu0 0.0
  %1102 = vmatpush1.msra.mxu0 %v28
  %1103 = vmatprep.subr.mxu0 0.0
  %1104 = vmatpush1.msra.mxu0 %v29
  %1105 = vmatprep.subr.mxu0 0.0
  %1106 = vmatpush1.msra.mxu0 %v30
  %1107 = vmatprep.subr.mxu0 0.0
  %1108 = vmatpush1.msra.mxu0 0.0
  %1109 = vmatprep.subr.mxu0 0.0
  %1110 = vmatpush1.msra.mxu0 0.0
  %1111 = vmatprep.subr.mxu0 0.0
  %1112 = vmatpush1.msra.mxu0 0.0
  %1113 = vmatprep.subr.mxu0 0.0
  %1114 = vmatpush1.msra.mxu0 0.0
  %1115 = vmatprep.subr.mxu0 0.0
  %1116 = vmatpush1.msra.mxu0 0.0
  %1117 = vmatprep.subr.mxu0 0.0
  %1118 = vmatpush1.msra.mxu0 0.0
  %1119 = vmatprep.subr.mxu0 0.0
  %1120 = vmatpush1.msra.mxu0 0.0
  %1121 = vmatprep.subr.mxu0 0.0
  %1122 = vmatpush1.msra.mxu0 0.0
  %1123 = vmatprep.subr.mxu0 0.0
  %1124 = vmatpush1.msra.mxu0 0.0
  %1125 = vmatprep.subr.mxu0 0.0
  %1126 = vmatpush1.msra.mxu0 0.0
  %1127 = vmatprep.subr.mxu0 0.0
  %1128 = vmatpush1.msra.mxu0 0.0
  %1129 = vmatprep.subr.mxu0 0.0
  %1130 = vmatpush1.msra.mxu0 0.0
  %1131 = vmatprep.subr.mxu0 0.0
  %1132 = vmatpush1.msra.mxu0 0.0
  %1133 = vmatprep.subr.mxu0 0.0
  %1134 = vmatpush1.msra.mxu0 0.0
  %1135 = vmatprep.subr.mxu0 0.0
  %1136 = vmatpush1.msra.mxu0 0.0
  %1137 = vmatprep.subr.mxu0 0.0
  %1138 = vmatpush1.msra.mxu0 0.0
  %1139 = vmatprep.subr.mxu0 0.0
  %1140 = vmatpush1.msra.mxu0 0.0
  %1141 = vmatprep.subr.mxu0 0.0
  %1142 = vmatpush1.msra.mxu0 0.0
  %1143 = vmatprep.subr.mxu0 0.0
  %1144 = vmatpush1.msra.mxu0 0.0
  %1145 = vmatprep.subr.mxu0 0.0
  %1146 = vmatpush1.msra.mxu0 0.0
  %1147 = vmatprep.subr.mxu0 0.0
  %1148 = vmatpush1.msra.mxu0 0.0
  %1149 = vmatprep.subr.mxu0 0.0
  %1150 = vmatpush1.msra.mxu0 0.0
  %1151 = vmatprep.subr.mxu0 0.0
  %1152 = vmatpush1.msra.mxu0 0.0
  %1153 = vmatprep.subr.mxu0 0.0
  %1154 = vmatpush1.msra.mxu0 0.0
  %1155 = vmatprep.subr.mxu0 0.0
  %1156 = vmatpush1.msra.mxu0 0.0
  %1157 = vmatprep.subr.mxu0 0.0
  %1158 = vmatpush1.msra.mxu0 0.0
  %1159 = vmatprep.subr.mxu0 0.0
  %1160 = vmatpush1.msra.mxu0 0.0
  %1161 = vmatprep.subr.mxu0 0.0
  %1162 = vmatpush1.msra.mxu0 0.0
  %1163 = vmatprep.mubr.f32.mxu0 0.0
  %1164 = vmatmul.mubr.f32.gmra.mrb[0].mxu0 %v1097
  %v1165 = vpop.f32.mrb[0].mxu0
  %v1166 = vadd.f32 0.0, %v1165
  %v1167 = vpop.f32.mrb[0].mxu0
  %1168 = vdwg.mxu0
  %v1170 = vrot.slane %v1166, 1
  %v1171 = vrot.slane %v1166, 2
  %v1174 = vadd.f32 %v116, %v1170
  %v1175 = vadd.f32 %v121, %v1171
  %v1176 = vxor.u32 %v1174, 2147483648
  %v1177 = vxor.u32 %v1175, 2147483648
  %v1178 = vmul.f32 %v1176, 1.442695
  %v1179 = vpow.pop %v1178
  %v1180 = vmul.f32 %v1177, 1.442695
  %v1181 = vpow.pop %v1180
  %v1182 = vadd.f32 %v1179, 1.0
  %v1183 = vadd.f32 %v1181, 1.0
  %v1184 = vrcp.pop %v1182
  %v1185 = vmul.f32 1.0, %v1184
  %v1186 = vrcp.pop %v1183
  %v1187 = vmul.f32 1.0, %v1186
  %v1188 = vtanh.pop %v1174
  %v1189 = vtanh.pop %v1175
  %v1192 = vrot.slane %v1076, 7
  %v1193 = vrot.slane %v1077, 7
  %v1196 = vmul.f32 %v1185, %v1192
  %v1197 = vmul.f32 %v1187, %v1193
  %1200 = vrot.lane.b32.xlu0 %v1188, 32
  %v1201 = vpop.permute.xlu0 %1200
  %1202 = vrot.lane.b32.xlu0 %v1189, 32
  %v1203 = vpop.permute.xlu0 %1202
  %v1206 = vmul.f32 %v1185, %v1201
  %v1207 = vmul.f32 %v1187, %v1203
  %1210 = vrot.lane.b32.xlu0 %v1206, 32
  %v1211 = vpop.permute.xlu0 %1210
  %1212 = vrot.lane.b32.xlu0 %v1207, 32
  %v1213 = vpop.permute.xlu0 %1212
  %v1216 = vadd.f32 %v1196, %v1211
  %v1217 = vadd.f32 %v1197, %v1213
  %v1218 = vtanh.pop %v1216
  %v1219 = vtanh.pop %v1217
  %1222 = vrot.lane.b32.xlu0 %v1218, 32
  %v1223 = vpop.permute.xlu0 %1222
  %1224 = vrot.lane.b32.xlu0 %v1219, 32
  %v1225 = vpop.permute.xlu0 %1224
  %v1228 = vmul.f32 %v1185, %v1223
  %v1229 = vmul.f32 %v1187, %v1225
  %vm1230 = vcmask 1040384
  %v1231 = vsel %vm1230, %v250, %v389
  %v1232 = vsel %vm1230, %v251, %v390
  %vm1233 = vcmask 1041408
  %v1234 = vsel %vm1233, %v1231, %v528
  %v1235 = vsel %vm1233, %v1232, %v529
  %vm1236 = vcmask 1042432
  %v1237 = vsel %vm1236, %v1234, %v668
  %v1238 = vsel %vm1236, %v1235, %v669
  %vm1239 = vcmask 1043456
  %v1240 = vsel %vm1239, %v1237, %v808
  %v1241 = vsel %vm1239, %v1238, %v809
  %vm1242 = vcmask 1044480
  %v1243 = vsel %vm1242, %v1240, %v948
  %v1244 = vsel %vm1242, %v1241, %v949
  %vm1245 = vcmask 1045504
  %v1246 = vsel %vm1245, %v1243, %v1088
  %v1247 = vsel %vm1245, %v1244, %v1089
  %vm1248 = vcmask 1046528
  %v1249 = vsel %vm1248, %v1246, %v1228
  %v1250 = vsel %vm1248, %v1247, %v1229
  %v1252 = vlaneseq
  %v1253 = vshrl.u32 %v1252, 7
  %v1254 = vsub.s32 0, %v1253
  %v1255 = vrot.slane %v32, %v1254
  %1256 = vrot.lane.b32.xlu0 %v1255, 64
  %v1257 = vpop.permute.xlu0 %1256
  %v1259 = vmul.f32 %v1249, %v1257
  %v1260 = vmul.f32 %v1250, %v1257
  %1263 = vrot.lane.b32.xlu0 %v1259, 64
  %v1264 = vpop.permute.xlu0 %1263
  %1265 = vrot.lane.b32.xlu0 %v1260, 64
  %v1266 = vpop.permute.xlu0 %1265
  %v1269 = vsel %vm124, %v1264, 0.0
  %1270 = vadd.xlane.f32.xlu0 %v1269
  %v1271 = vpop.xlane.xlu0 %1270
  %v1272 = vsel %vm124, %v1266, 0.0
  %1273 = vadd.xlane.f32.xlu0 %v1272
  %v1274 = vpop.xlane.xlu0 %1273
  %v1276 = vlaneseq
  %v1277 = vshrl.u32 %v1276, 7
  %v1278 = vsub.s32 0, %v1277
  %v1279 = vrot.slane %v33, %v1278
  %v1281 = vadd.f32 %v1271, %v1279
  %v1282 = vadd.f32 %v1274, %v1279
  %v1283 = vxor.u32 %v1281, 2147483648
  %v1284 = vxor.u32 %v1282, 2147483648
  %v1285 = vmul.f32 %v1283, 1.442695
  %v1286 = vpow.pop %v1285
  %v1287 = vmul.f32 %v1284, 1.442695
  %v1288 = vpow.pop %v1287
  %v1289 = vadd.f32 %v1286, 1.0
  %v1290 = vadd.f32 %v1288, 1.0
  %v1291 = vrcp.pop %v1289
  %v1292 = vmul.f32 1.0, %v1291
  %v1293 = vrcp.pop %v1290
  %v1294 = vmul.f32 1.0, %v1293
  %vm1295 = vcmask 7168
  %1296 = vst.msk [vmem:[%s6] sm:$0xff] %vm1295, %v1292
  %1297 = vst.msk [vmem:[%s6 + $0x8] sm:$0xff] %vm1295, %v1294
  // Predicated region
  $region26: #{lstm_classifier.1} parent=0 // pred_check
    _
  $region27: #{lstm_classifier.1} parent=0 // pred_check_branch
    %1299 = sbr.rel (0) target = $region29
  $region28: #{lstm_classifier.1} parent=0 // pred_region
    _
  $region29: #{lstm_classifier.1} parent=0 // pred_fallthru
    _
  // Predicated region
  $region30: #{lstm_classifier.1} parent=0 // pred_check
    _
  $region31: #{lstm_classifier.1} parent=0 // pred_check_branch
    %1301 = sbr.rel (0) target = $region33
  $region32: #{lstm_classifier.1} parent=0 // pred_region
    _
  $region33: #{lstm_classifier.1} parent=0 // pred_fallthru
    _

</llo_original>
